<compile_context>
chip_gen: v5e
topology: v5e:2x2
jax: 0.10.0
libtpu: 0.0.40
codegen_flags: <defaults>
</compile_context>

<pallas_src>
import functools

import jax
import jax.numpy as jnp
from jax import lax
from jax.experimental import pallas as pl
from jax.experimental.pallas import tpu as pltpu


def lstm_classifier_kernel(tok_ref, emb_ref, wx_ref, wh_ref, b_ref,
                           wo_ref, bo_ref, out_ref, *, T, B, H, V):
    # ---- fused embedding gather (re-associated: select rows, then project) ----
    tok = tok_ref[...]                                          # (T*B, 1) int32
    ids = lax.broadcasted_iota(jnp.int32, (T * B, V), 1)        # (T*B, V)
    onehot = (tok == ids).astype(jnp.float32)                   # (T*B, V)
    emb_rows = jnp.dot(onehot, emb_ref[...],
                       preferred_element_type=jnp.float32)      # (T*B, E)
    # Hoist the entire input projection (+ b_ih + b_hh) off the serial path.
    xw = jnp.dot(emb_rows, wx_ref[...],
                 preferred_element_type=jnp.float32) + b_ref[...]   # (T*B, 4H)

    # Recurrent weight cast to bf16 once; per-step matmul accumulates in f32.
    wh_bf = wh_ref[...].astype(jnp.bfloat16)                    # (H, 4H)

    # ---- serial LSTM recurrence: per step only h @ Wh + elementwise ---------
    h = jnp.zeros((B, H), jnp.float32)
    c = jnp.zeros((B, H), jnp.float32)
    for t in range(T):      # T small & static -> unrolled (use fori_loop if T grows)
        gates = xw[t * B:(t + 1) * B, :] + jnp.dot(
            h.astype(jnp.bfloat16), wh_bf,
            preferred_element_type=jnp.float32)                 # (B, 4H) f32
        # Whole-tile EUP passes (gate tile is one vreg wide since 4H == 128),
        # then static lane slices.  PyTorch gate order: i, f, g, o.
        sig = jax.nn.sigmoid(gates)
        tnh = jnp.tanh(gates)
        i_g = sig[:, 0 * H:1 * H]
        f_g = sig[:, 1 * H:2 * H]
        g_g = tnh[:, 2 * H:3 * H]
        o_g = sig[:, 3 * H:4 * H]
        c = f_g * c + i_g * g_g
        h = o_g * jnp.tanh(c)

    # ---- hidden2score: Linear(H, 1) as a VPU multiply + lane reduce ---------
    # NOTE: at padded B=8 the (B,1) store is one masked vreg either way; a
    # lane-dense (1,B) layout only pays once B grows (see TODO above).
    score = jnp.sum(h * wo_ref[...], axis=-1, keepdims=True) + bo_ref[...]  # (B,1)
    out_ref[...] = score.astype(out_ref.dtype)


def rnn_classifier_forward(tokens, emb_table, wx, wh, b, wo, bo):
    """tokens: (T, B) int tokens. Returns (1, B, 1) f32 score (matches PyTorch)."""
    T, B = tokens.shape
    V, E = emb_table.shape
    H = wh.shape[0]

    # Pad batch to the f32 sublane minimum (8): zero-padded batch rows run an
    # independent (discarded) LSTM and keep every state/gate tile unmasked.
    Bp = max(8, -(-B // 8) * 8)
    tok_p = jnp.zeros((T, Bp), jnp.int32).at[:, :B].set(tokens.astype(jnp.int32))
    tok_flat = tok_p.reshape(T * Bp, 1)              # lane-friendly 2D int32
    wo_row = wo.reshape(1, H)                        # (H,1) -> (1,H)

    vmem = pl.BlockSpec(memory_space=pltpu.MemorySpace.VMEM)
    kernel = functools.partial(lstm_classifier_kernel, T=T, B=Bp, H=H, V=V)

    out = pl.pallas_call(
        kernel,
        out_shape=jax.ShapeDtypeStruct((Bp, 1), jnp.float32),
        in_specs=[vmem] * 7,        # everything (<30 KB total) resident in VMEM
        out_specs=vmem,
    )(tok_flat, emb_table, wx, wh, b, wo_row, bo)
    return out[:B].reshape(1, B, 1)


def rnn_classifier_ref(tokens, emb_table, wx, wh, b, wo, bo):
    """Pure-JAX f32 reference of the same forward pass (correctness check)."""
    H = wh.shape[0]
    embeds = emb_table[tokens]                     # (T, B, E)
    B = embeds.shape[1]

    def step(carry, x_t):
        h, c = carry
        gates = x_t @ wx + h @ wh + b
        i = jax.nn.sigmoid(gates[:, 0 * H:1 * H])
        f = jax.nn.sigmoid(gates[:, 1 * H:2 * H])
        g = jnp.tanh(gates[:, 2 * H:3 * H])
        o = jax.nn.sigmoid(gates[:, 3 * H:4 * H])
        c = f * c + i * g
        h = o * jnp.tanh(c)
        return (h, c), None

    h0 = jnp.zeros((B, H), jnp.float32)
    (h_n, _), _ = lax.scan(step, (h0, h0), embeds)
    return (h_n @ wo + bo)[None]                   # (1, B, 1)


if __name__ == "__main__":
    # Small, forward-consistent shapes.
    T, B = 8, 4            # seq_len, batch
    V, E, H = 50, 16, 32   # vocab_size, embedding_dim, hidden_dim

    key = jax.random.PRNGKey(0)
    k_tok, k_emb, k_wx, k_wh, k_b, k_wo, k_bo = jax.random.split(key, 7)

    tokens = jax.random.randint(k_tok, (T, B), 0, V, dtype=jnp.int32)
    emb_table = jax.random.normal(k_emb, (V, E), jnp.float32) * 0.1
    wx = jax.random.normal(k_wx, (E, 4 * H), jnp.float32) * 0.1   # weight_ih_l0^T
    wh = jax.random.normal(k_wh, (H, 4 * H), jnp.float32) * 0.1   # weight_hh_l0^T
    b = jax.random.normal(k_b, (1, 4 * H), jnp.float32) * 0.1     # b_ih + b_hh
    wo = jax.random.normal(k_wo, (H, 1), jnp.float32) * 0.1       # hidden2score.weight^T
    bo = jax.random.normal(k_bo, (1, 1), jnp.float32) * 0.1       # hidden2score.bias

    score = rnn_classifier_forward(tokens, emb_table, wx, wh, b, wo, bo)
    score = jax.block_until_ready(score)

    ref = rnn_classifier_ref(tokens, emb_table, wx, wh, b, wo, bo)
    assert score.shape == (1, B, 1), score.shape
    # Tolerance widened vs. the f32 reference because the recurrent h@Wh
    # operands are bf16 (MXU-native); error compounds mildly over T=8 steps.
    assert jnp.allclose(score, ref, atol=1e-2, rtol=1e-2), (score, ref)

    # TODO(synk): char=True (CharacterRNN concat), bidirectional and
    # num_layers>1 LSTM variants are config branches not exercised here.
    print("KERNEL_OK")
</pallas_src>

<mosaic_0001>
module attributes {stable_mosaic.version = 11 : i64} {
  func.func @lstm_classifier_kernel(%arg0: memref<64x1xi32, #tpu.memory_space<vmem>>, %arg1: memref<50x16xf32, #tpu.memory_space<vmem>>, %arg2: memref<16x128xf32, #tpu.memory_space<vmem>>, %arg3: memref<32x128xf32, #tpu.memory_space<vmem>>, %arg4: memref<1x128xf32, #tpu.memory_space<vmem>>, %arg5: memref<1x32xf32, #tpu.memory_space<vmem>>, %arg6: memref<1x1xf32, #tpu.memory_space<vmem>>, %arg7: memref<8x1xf32, #tpu.memory_space<vmem>>) attributes {dimension_semantics = [], scalar_prefetch = 0 : i64, scratch_operands = 0 : i64, tpu.core_type = #tpu.core_type<tc>} {
    %c0 = arith.constant 0 : index
    %c0_0 = arith.constant 0 : index
    %0 = vector.load %arg0[%c0, %c0_0] : memref<64x1xi32, #tpu.memory_space<vmem>>, vector<64x1xi32>
    %1 = tpu.iota {dimensions = array<i32: 1>} : vector<64x50xi32>
    %2 = vector.broadcast %0 : vector<64x1xi32> to vector<64x50xi32>
    %3 = arith.cmpi eq, %2, %1 : vector<64x50xi32>
    %4 = arith.extui %3 : vector<64x50xi1> to vector<64x50xi32>
    %5 = arith.sitofp %4 : vector<64x50xi32> to vector<64x50xf32>
    %c0_1 = arith.constant 0 : index
    %c0_2 = arith.constant 0 : index
    %6 = vector.load %arg1[%c0_1, %c0_2] : memref<50x16xf32, #tpu.memory_space<vmem>>, vector<50x16xf32>
    %cst = arith.constant dense<0.000000e+00> : vector<64x16xf32>
    %7 = tpu.matmul %5, %6, %cst {dimension_numbers = #tpu.dot_dimension_numbers<[1], [0], [0], [1], [0, 0, 1, 1], [], []>} : vector<64x50xf32>, vector<50x16xf32>, vector<64x16xf32> -> vector<64x16xf32>
    %c0_3 = arith.constant 0 : index
    %c0_4 = arith.constant 0 : index
    %8 = vector.load %arg2[%c0_3, %c0_4] : memref<16x128xf32, #tpu.memory_space<vmem>>, vector<16x128xf32>
    %cst_5 = arith.constant dense<0.000000e+00> : vector<64x128xf32>
    %9 = tpu.matmul %7, %8, %cst_5 {dimension_numbers = #tpu.dot_dimension_numbers<[1], [0], [0], [1], [0, 0, 1, 1], [], []>} : vector<64x16xf32>, vector<16x128xf32>, vector<64x128xf32> -> vector<64x128xf32>
    %c0_6 = arith.constant 0 : index
    %c0_7 = arith.constant 0 : index
    %10 = vector.load %arg4[%c0_6, %c0_7] : memref<1x128xf32, #tpu.memory_space<vmem>>, vector<1x128xf32>
    %11 = vector.broadcast %10 : vector<1x128xf32> to vector<64x128xf32>
    %12 = arith.addf %9, %11 : vector<64x128xf32>
    %c0_8 = arith.constant 0 : index
    %c0_9 = arith.constant 0 : index
    %13 = vector.load %arg3[%c0_8, %c0_9] : memref<32x128xf32, #tpu.memory_space<vmem>>, vector<32x128xf32>
    %14 = arith.truncf %13 : vector<32x128xf32> to vector<32x128xbf16>
    %cst_10 = arith.constant 0.000000e+00 : f32
    %15 = vector.broadcast %cst_10 : f32 to vector<8x32xf32>
    %cst_11 = arith.constant 0.000000e+00 : f32
    %16 = vector.broadcast %cst_11 : f32 to vector<8x32xf32>
    %17 = vector.extract_strided_slice %12 {offsets = [0, 0], sizes = [8, 128], strides = [1, 1]} : vector<64x128xf32> to vector<8x128xf32>
    %18 = arith.truncf %15 : vector<8x32xf32> to vector<8x32xbf16>
    %cst_12 = arith.constant dense<0.000000e+00> : vector<8x128xf32>
    %19 = tpu.matmul %18, %14, %cst_12 {dimension_numbers = #tpu.dot_dimension_numbers<[1], [0], [0], [1], [0, 0, 1, 1], [], []>} : vector<8x32xbf16>, vector<32x128xbf16>, vector<8x128xf32> -> vector<8x128xf32>
    %20 = arith.addf %17, %19 : vector<8x128xf32>
    %21 = arith.negf %20 : vector<8x128xf32>
    %22 = math.exp %21 : vector<8x128xf32>
    %cst_13 = arith.constant 1.000000e+00 : f32
    %23 = vector.broadcast %cst_13 : f32 to vector<8x128xf32>
    %24 = arith.addf %23, %22 : vector<8x128xf32>
    %25 = arith.divf %23, %24 : vector<8x128xf32>
    %26 = math.tanh %20 : vector<8x128xf32>
    %27 = vector.extract_strided_slice %25 {offsets = [0, 0], sizes = [8, 32], strides = [1, 1]} : vector<8x128xf32> to vector<8x32xf32>
    %28 = vector.extract_strided_slice %25 {offsets = [0, 32], sizes = [8, 32], strides = [1, 1]} : vector<8x128xf32> to vector<8x32xf32>
    %29 = vector.extract_strided_slice %26 {offsets = [0, 64], sizes = [8, 32], strides = [1, 1]} : vector<8x128xf32> to vector<8x32xf32>
    %30 = vector.extract_strided_slice %25 {offsets = [0, 96], sizes = [8, 32], strides = [1, 1]} : vector<8x128xf32> to vector<8x32xf32>
    %31 = arith.mulf %28, %16 : vector<8x32xf32>
    %32 = arith.mulf %27, %29 : vector<8x32xf32>
    %33 = arith.addf %31, %32 : vector<8x32xf32>
    %34 = math.tanh %33 : vector<8x32xf32>
    %35 = arith.mulf %30, %34 : vector<8x32xf32>
    %36 = vector.extract_strided_slice %12 {offsets = [8, 0], sizes = [8, 128], strides = [1, 1]} : vector<64x128xf32> to vector<8x128xf32>
    %37 = arith.truncf %35 : vector<8x32xf32> to vector<8x32xbf16>
    %cst_14 = arith.constant dense<0.000000e+00> : vector<8x128xf32>
    %38 = tpu.matmul %37, %14, %cst_14 {dimension_numbers = #tpu.dot_dimension_numbers<[1], [0], [0], [1], [0, 0, 1, 1], [], []>} : vector<8x32xbf16>, vector<32x128xbf16>, vector<8x128xf32> -> vector<8x128xf32>
    %39 = arith.addf %36, %38 : vector<8x128xf32>
    %40 = arith.negf %39 : vector<8x128xf32>
    %41 = math.exp %40 : vector<8x128xf32>
    %cst_15 = arith.constant 1.000000e+00 : f32
    %42 = vector.broadcast %cst_15 : f32 to vector<8x128xf32>
    %43 = arith.addf %42, %41 : vector<8x128xf32>
    %44 = arith.divf %42, %43 : vector<8x128xf32>
    %45 = math.tanh %39 : vector<8x128xf32>
    %46 = vector.extract_strided_slice %44 {offsets = [0, 0], sizes = [8, 32], strides = [1, 1]} : vector<8x128xf32> to vector<8x32xf32>
    %47 = vector.extract_strided_slice %44 {offsets = [0, 32], sizes = [8, 32], strides = [1, 1]} : vector<8x128xf32> to vector<8x32xf32>
    %48 = vector.extract_strided_slice %45 {offsets = [0, 64], sizes = [8, 32], strides = [1, 1]} : vector<8x128xf32> to vector<8x32xf32>
    %49 = vector.extract_strided_slice %44 {offsets = [0, 96], sizes = [8, 32], strides = [1, 1]} : vector<8x128xf32> to vector<8x32xf32>
    %50 = arith.mulf %47, %33 : vector<8x32xf32>
    %51 = arith.mulf %46, %48 : vector<8x32xf32>
    %52 = arith.addf %50, %51 : vector<8x32xf32>
    %53 = math.tanh %52 : vector<8x32xf32>
    %54 = arith.mulf %49, %53 : vector<8x32xf32>
    %55 = vector.extract_strided_slice %12 {offsets = [16, 0], sizes = [8, 128], strides = [1, 1]} : vector<64x128xf32> to vector<8x128xf32>
    %56 = arith.truncf %54 : vector<8x32xf32> to vector<8x32xbf16>
    %cst_16 = arith.constant dense<0.000000e+00> : vector<8x128xf32>
    %57 = tpu.matmul %56, %14, %cst_16 {dimension_numbers = #tpu.dot_dimension_numbers<[1], [0], [0], [1], [0, 0, 1, 1], [], []>} : vector<8x32xbf16>, vector<32x128xbf16>, vector<8x128xf32> -> vector<8x128xf32>
    %58 = arith.addf %55, %57 : vector<8x128xf32>
    %59 = arith.negf %58 : vector<8x128xf32>
    %60 = math.exp %59 : vector<8x128xf32>
    %cst_17 = arith.constant 1.000000e+00 : f32
    %61 = vector.broadcast %cst_17 : f32 to vector<8x128xf32>
    %62 = arith.addf %61, %60 : vector<8x128xf32>
    %63 = arith.divf %61, %62 : vector<8x128xf32>
    %64 = math.tanh %58 : vector<8x128xf32>
    %65 = vector.extract_strided_slice %63 {offsets = [0, 0], sizes = [8, 32], strides = [1, 1]} : vector<8x128xf32> to vector<8x32xf32>
    %66 = vector.extract_strided_slice %63 {offsets = [0, 32], sizes = [8, 32], strides = [1, 1]} : vector<8x128xf32> to vector<8x32xf32>
    %67 = vector.extract_strided_slice %64 {offsets = [0, 64], sizes = [8, 32], strides = [1, 1]} : vector<8x128xf32> to vector<8x32xf32>
    %68 = vector.extract_strided_slice %63 {offsets = [0, 96], sizes = [8, 32], strides = [1, 1]} : vector<8x128xf32> to vector<8x32xf32>
    %69 = arith.mulf %66, %52 : vector<8x32xf32>
    %70 = arith.mulf %65, %67 : vector<8x32xf32>
    %71 = arith.addf %69, %70 : vector<8x32xf32>
    %72 = math.tanh %71 : vector<8x32xf32>
    %73 = arith.mulf %68, %72 : vector<8x32xf32>
    %74 = vector.extract_strided_slice %12 {offsets = [24, 0], sizes = [8, 128], strides = [1, 1]} : vector<64x128xf32> to vector<8x128xf32>
    %75 = arith.truncf %73 : vector<8x32xf32> to vector<8x32xbf16>
    %cst_18 = arith.constant dense<0.000000e+00> : vector<8x128xf32>
    %76 = tpu.matmul %75, %14, %cst_18 {dimension_numbers = #tpu.dot_dimension_numbers<[1], [0], [0], [1], [0, 0, 1, 1], [], []>} : vector<8x32xbf16>, vector<32x128xbf16>, vector<8x128xf32> -> vector<8x128xf32>
    %77 = arith.addf %74, %76 : vector<8x128xf32>
    %78 = arith.negf %77 : vector<8x128xf32>
    %79 = math.exp %78 : vector<8x128xf32>
    %cst_19 = arith.constant 1.000000e+00 : f32
    %80 = vector.broadcast %cst_19 : f32 to vector<8x128xf32>
    %81 = arith.addf %80, %79 : vector<8x128xf32>
    %82 = arith.divf %80, %81 : vector<8x128xf32>
    %83 = math.tanh %77 : vector<8x128xf32>
    %84 = vector.extract_strided_slice %82 {offsets = [0, 0], sizes = [8, 32], strides = [1, 1]} : vector<8x128xf32> to vector<8x32xf32>
    %85 = vector.extract_strided_slice %82 {offsets = [0, 32], sizes = [8, 32], strides = [1, 1]} : vector<8x128xf32> to vector<8x32xf32>
    %86 = vector.extract_strided_slice %83 {offsets = [0, 64], sizes = [8, 32], strides = [1, 1]} : vector<8x128xf32> to vector<8x32xf32>
    %87 = vector.extract_strided_slice %82 {offsets = [0, 96], sizes = [8, 32], strides = [1, 1]} : vector<8x128xf32> to vector<8x32xf32>
    %88 = arith.mulf %85, %71 : vector<8x32xf32>
    %89 = arith.mulf %84, %86 : vector<8x32xf32>
    %90 = arith.addf %88, %89 : vector<8x32xf32>
    %91 = math.tanh %90 : vector<8x32xf32>
    %92 = arith.mulf %87, %91 : vector<8x32xf32>
    %93 = vector.extract_strided_slice %12 {offsets = [32, 0], sizes = [8, 128], strides = [1, 1]} : vector<64x128xf32> to vector<8x128xf32>
    %94 = arith.truncf %92 : vector<8x32xf32> to vector<8x32xbf16>
    %cst_20 = arith.constant dense<0.000000e+00> : vector<8x128xf32>
    %95 = tpu.matmul %94, %14, %cst_20 {dimension_numbers = #tpu.dot_dimension_numbers<[1], [0], [0], [1], [0, 0, 1, 1], [], []>} : vector<8x32xbf16>, vector<32x128xbf16>, vector<8x128xf32> -> vector<8x128xf32>
    %96 = arith.addf %93, %95 : vector<8x128xf32>
    %97 = arith.negf %96 : vector<8x128xf32>
    %98 = math.exp %97 : vector<8x128xf32>
    %cst_21 = arith.constant 1.000000e+00 : f32
    %99 = vector.broadcast %cst_21 : f32 to vector<8x128xf32>
    %100 = arith.addf %99, %98 : vector<8x128xf32>
    %101 = arith.divf %99, %100 : vector<8x128xf32>
    %102 = math.tanh %96 : vector<8x128xf32>
    %103 = vector.extract_strided_slice %101 {offsets = [0, 0], sizes = [8, 32], strides = [1, 1]} : vector<8x128xf32> to vector<8x32xf32>
    %104 = vector.extract_strided_slice %101 {offsets = [0, 32], sizes = [8, 32], strides = [1, 1]} : vector<8x128xf32> to vector<8x32xf32>
    %105 = vector.extract_strided_slice %102 {offsets = [0, 64], sizes = [8, 32], strides = [1, 1]} : vector<8x128xf32> to vector<8x32xf32>
    %106 = vector.extract_strided_slice %101 {offsets = [0, 96], sizes = [8, 32], strides = [1, 1]} : vector<8x128xf32> to vector<8x32xf32>
    %107 = arith.mulf %104, %90 : vector<8x32xf32>
    %108 = arith.mulf %103, %105 : vector<8x32xf32>
    %109 = arith.addf %107, %108 : vector<8x32xf32>
    %110 = math.tanh %109 : vector<8x32xf32>
    %111 = arith.mulf %106, %110 : vector<8x32xf32>
    %112 = vector.extract_strided_slice %12 {offsets = [40, 0], sizes = [8, 128], strides = [1, 1]} : vector<64x128xf32> to vector<8x128xf32>
    %113 = arith.truncf %111 : vector<8x32xf32> to vector<8x32xbf16>
    %cst_22 = arith.constant dense<0.000000e+00> : vector<8x128xf32>
    %114 = tpu.matmul %113, %14, %cst_22 {dimension_numbers = #tpu.dot_dimension_numbers<[1], [0], [0], [1], [0, 0, 1, 1], [], []>} : vector<8x32xbf16>, vector<32x128xbf16>, vector<8x128xf32> -> vector<8x128xf32>
    %115 = arith.addf %112, %114 : vector<8x128xf32>
    %116 = arith.negf %115 : vector<8x128xf32>
    %117 = math.exp %116 : vector<8x128xf32>
    %cst_23 = arith.constant 1.000000e+00 : f32
    %118 = vector.broadcast %cst_23 : f32 to vector<8x128xf32>
    %119 = arith.addf %118, %117 : vector<8x128xf32>
    %120 = arith.divf %118, %119 : vector<8x128xf32>
    %121 = math.tanh %115 : vector<8x128xf32>
    %122 = vector.extract_strided_slice %120 {offsets = [0, 0], sizes = [8, 32], strides = [1, 1]} : vector<8x128xf32> to vector<8x32xf32>
    %123 = vector.extract_strided_slice %120 {offsets = [0, 32], sizes = [8, 32], strides = [1, 1]} : vector<8x128xf32> to vector<8x32xf32>
    %124 = vector.extract_strided_slice %121 {offsets = [0, 64], sizes = [8, 32], strides = [1, 1]} : vector<8x128xf32> to vector<8x32xf32>
    %125 = vector.extract_strided_slice %120 {offsets = [0, 96], sizes = [8, 32], strides = [1, 1]} : vector<8x128xf32> to vector<8x32xf32>
    %126 = arith.mulf %123, %109 : vector<8x32xf32>
    %127 = arith.mulf %122, %124 : vector<8x32xf32>
    %128 = arith.addf %126, %127 : vector<8x32xf32>
    %129 = math.tanh %128 : vector<8x32xf32>
    %130 = arith.mulf %125, %129 : vector<8x32xf32>
    %131 = vector.extract_strided_slice %12 {offsets = [48, 0], sizes = [8, 128], strides = [1, 1]} : vector<64x128xf32> to vector<8x128xf32>
    %132 = arith.truncf %130 : vector<8x32xf32> to vector<8x32xbf16>
    %cst_24 = arith.constant dense<0.000000e+00> : vector<8x128xf32>
    %133 = tpu.matmul %132, %14, %cst_24 {dimension_numbers = #tpu.dot_dimension_numbers<[1], [0], [0], [1], [0, 0, 1, 1], [], []>} : vector<8x32xbf16>, vector<32x128xbf16>, vector<8x128xf32> -> vector<8x128xf32>
    %134 = arith.addf %131, %133 : vector<8x128xf32>
    %135 = arith.negf %134 : vector<8x128xf32>
    %136 = math.exp %135 : vector<8x128xf32>
    %cst_25 = arith.constant 1.000000e+00 : f32
    %137 = vector.broadcast %cst_25 : f32 to vector<8x128xf32>
    %138 = arith.addf %137, %136 : vector<8x128xf32>
    %139 = arith.divf %137, %138 : vector<8x128xf32>
    %140 = math.tanh %134 : vector<8x128xf32>
    %141 = vector.extract_strided_slice %139 {offsets = [0, 0], sizes = [8, 32], strides = [1, 1]} : vector<8x128xf32> to vector<8x32xf32>
    %142 = vector.extract_strided_slice %139 {offsets = [0, 32], sizes = [8, 32], strides = [1, 1]} : vector<8x128xf32> to vector<8x32xf32>
    %143 = vector.extract_strided_slice %140 {offsets = [0, 64], sizes = [8, 32], strides = [1, 1]} : vector<8x128xf32> to vector<8x32xf32>
    %144 = vector.extract_strided_slice %139 {offsets = [0, 96], sizes = [8, 32], strides = [1, 1]} : vector<8x128xf32> to vector<8x32xf32>
    %145 = arith.mulf %142, %128 : vector<8x32xf32>
    %146 = arith.mulf %141, %143 : vector<8x32xf32>
    %147 = arith.addf %145, %146 : vector<8x32xf32>
    %148 = math.tanh %147 : vector<8x32xf32>
    %149 = arith.mulf %144, %148 : vector<8x32xf32>
    %150 = vector.extract_strided_slice %12 {offsets = [56, 0], sizes = [8, 128], strides = [1, 1]} : vector<64x128xf32> to vector<8x128xf32>
    %151 = arith.truncf %149 : vector<8x32xf32> to vector<8x32xbf16>
    %cst_26 = arith.constant dense<0.000000e+00> : vector<8x128xf32>
    %152 = tpu.matmul %151, %14, %cst_26 {dimension_numbers = #tpu.dot_dimension_numbers<[1], [0], [0], [1], [0, 0, 1, 1], [], []>} : vector<8x32xbf16>, vector<32x128xbf16>, vector<8x128xf32> -> vector<8x128xf32>
    %153 = arith.addf %150, %152 : vector<8x128xf32>
    %154 = arith.negf %153 : vector<8x128xf32>
    %155 = math.exp %154 : vector<8x128xf32>
    %cst_27 = arith.constant 1.000000e+00 : f32
    %156 = vector.broadcast %cst_27 : f32 to vector<8x128xf32>
    %157 = arith.addf %156, %155 : vector<8x128xf32>
    %158 = arith.divf %156, %157 : vector<8x128xf32>
    %159 = math.tanh %153 : vector<8x128xf32>
    %160 = vector.extract_strided_slice %158 {offsets = [0, 0], sizes = [8, 32], strides = [1, 1]} : vector<8x128xf32> to vector<8x32xf32>
    %161 = vector.extract_strided_slice %158 {offsets = [0, 32], sizes = [8, 32], strides = [1, 1]} : vector<8x128xf32> to vector<8x32xf32>
    %162 = vector.extract_strided_slice %159 {offsets = [0, 64], sizes = [8, 32], strides = [1, 1]} : vector<8x128xf32> to vector<8x32xf32>
    %163 = vector.extract_strided_slice %158 {offsets = [0, 96], sizes = [8, 32], strides = [1, 1]} : vector<8x128xf32> to vector<8x32xf32>
    %164 = arith.mulf %161, %147 : vector<8x32xf32>
    %165 = arith.mulf %160, %162 : vector<8x32xf32>
    %166 = arith.addf %164, %165 : vector<8x32xf32>
    %167 = math.tanh %166 : vector<8x32xf32>
    %168 = arith.mulf %163, %167 : vector<8x32xf32>
    %c0_28 = arith.constant 0 : index
    %c0_29 = arith.constant 0 : index
    %169 = vector.load %arg5[%c0_28, %c0_29] : memref<1x32xf32, #tpu.memory_space<vmem>>, vector<1x32xf32>
    %170 = vector.broadcast %169 : vector<1x32xf32> to vector<8x32xf32>
    %171 = arith.mulf %168, %170 : vector<8x32xf32>
    %cst_30 = arith.constant dense<0.000000e+00> : vector<8xf32>
    %172 = vector.multi_reduction <add>, %171, %cst_30 [1] : vector<8x32xf32> to vector<8xf32>
    %173 = vector.shape_cast %172 : vector<8xf32> to vector<8x1xf32>
    %c0_31 = arith.constant 0 : index
    %c0_32 = arith.constant 0 : index
    %174 = vector.load %arg6[%c0_31, %c0_32] : memref<1x1xf32, #tpu.memory_space<vmem>>, vector<1x1xf32>
    %175 = vector.broadcast %174 : vector<1x1xf32> to vector<8x1xf32>
    %176 = arith.addf %173, %175 : vector<8x1xf32>
    %c0_33 = arith.constant 0 : index
    %c0_34 = arith.constant 0 : index
    %177 = vector.load %arg7[%c0_33, %c0_34] : memref<8x1xf32, #tpu.memory_space<vmem>>, vector<8x1xf32>
    tpu.vector_store %arg7[%c0_33, %c0_34], %176 {strides = array<i32>} : memref<8x1xf32, #tpu.memory_space<vmem>>, vector<8x1xf32>,
    return
  }
}

</mosaic_0001>

<llo_original>
// kernel: tpu_custom_call.1
$region0: #{tpu_custom_call.1}
  #allocation0 [shape = 'u32[]', space=smem, size = 0x4, offset = 0x4, fixed_abs, tag = 'smem constant byte address 0x4 - core index']
  #allocation1 [shape = 'u32[72,128]{1,0:T(1,128)}', space=vmem, size = 0x9000, scoped, tag = 'internal scratch']
  #allocation2 [shape = 'f32[1,1]{1,0:T(1,128)S(1)}', space=vmem, size = 0x200, scoped, tag = 'scoped memory for tpu_custom_call.1']
  %s0 = inlined_call_operand.vmem [shape: s32[64,1], index: 0, kind: input, shape index: {}]
  %s1 = inlined_call_operand.vmem [shape: f32[50,16], index: 1, kind: input, shape index: {}]
  %s2 = inlined_call_operand.vmem [shape: f32[16,128], index: 2, kind: input, shape index: {}]
  %s3 = inlined_call_operand.vmem [shape: f32[32,128], index: 3, kind: input, shape index: {}]
  %s4 = inlined_call_operand.vmem [shape: f32[1,128], index: 4, kind: input, shape index: {}]
  %s5 = inlined_call_operand.vmem [shape: f32[1,32], index: 5, kind: input, shape index: {}]
  %s6 = inlined_call_operand.<no memory space> [shape: f32[1,1], index: 6, kind: input, shape index: {}]
  %s7 = inlined_call_operand.vmem [shape: f32[8,1], index: 7, kind: output, shape index: {}]
  %s8 = sld [smem:[#allocation0]]
  $region38: #{tpu_custom_call.1} parent=0
    _
  %s10 = ssub.s32 1, %s8
  %s11 = scalar_select 0, %s10, %s8
  %v12 = vstv %s6
  %13 = vst [vmem:[#allocation2] sm:$0x1] %v12
  // Predicated region
  $region2: #{tpu_custom_call.1} parent=0 // pred_check
    _
  $region3: #{tpu_custom_call.1} parent=0 // pred_check_branch
    %15 = sbr.rel (0) target = $region5
  $region4: #{tpu_custom_call.1} parent=0 // pred_region
    _
  $region5: #{tpu_custom_call.1} parent=0 // pred_fallthru
    _
  // Predicated region
  $region6: #{tpu_custom_call.1} parent=0 // pred_check
    _
  $region7: #{tpu_custom_call.1} parent=0 // pred_check_branch
    %17 = sbr.rel (0) target = $region9
  $region8: #{tpu_custom_call.1} parent=0 // pred_region
    _
  $region9: #{tpu_custom_call.1} parent=0 // pred_fallthru
    _
  // Predicated region
  $region10: #{tpu_custom_call.1} parent=0 // pred_check
    _
  $region11: #{tpu_custom_call.1} parent=0 // pred_check_branch
    %19 = sbr.rel (0) target = $region13
  $region12: #{tpu_custom_call.1} parent=0 // pred_region
    _
  $region13: #{tpu_custom_call.1} parent=0 // pred_fallthru
    _
  // Predicated region
  $region14: #{tpu_custom_call.1} parent=0 // pred_check
    _
  $region15: #{tpu_custom_call.1} parent=0 // pred_check_branch
    %21 = sbr.rel (0) target = $region17
  $region16: #{tpu_custom_call.1} parent=0 // pred_region
    _
  $region17: #{tpu_custom_call.1} parent=0 // pred_fallthru
    _
  // Predicated region
  $region18: #{tpu_custom_call.1} parent=0 // pred_check
    _
  $region19: #{tpu_custom_call.1} parent=0 // pred_check_branch
    %23 = sbr.rel (0) target = $region21
  $region20: #{tpu_custom_call.1} parent=0 // pred_region
    _
  $region21: #{tpu_custom_call.1} parent=0 // pred_fallthru
    _
  // Predicated region
  $region22: #{tpu_custom_call.1} parent=0 // pred_check
    _
  $region23: #{tpu_custom_call.1} parent=0 // pred_check_branch
    %25 = sbr.rel (0) target = $region25
  $region24: #{tpu_custom_call.1} parent=0 // pred_region
    _
  $region25: #{tpu_custom_call.1} parent=0 // pred_fallthru
    _
  // Predicated region
  $region26: #{tpu_custom_call.1} parent=0 // pred_check
    _
  $region27: #{tpu_custom_call.1} parent=0 // pred_check_branch
    %27 = sbr.rel (0) target = $region29
  $region28: #{tpu_custom_call.1} parent=0 // pred_region
    _
  $region29: #{tpu_custom_call.1} parent=0 // pred_fallthru
    _
  %v29 = vld [vmem:[%s0] sm:$0xff]
  %v30 = vld [vmem:[%s0 + $0x8] sm:$0xff]
  %v31 = vld [vmem:[%s0 + $0x10] sm:$0xff]
  %v32 = vld [vmem:[%s0 + $0x18] sm:$0xff]
  %v33 = vld [vmem:[%s0 + $0x20] sm:$0xff]
  %v34 = vld [vmem:[%s0 + $0x28] sm:$0xff]
  %v35 = vld [vmem:[%s0 + $0x30] sm:$0xff]
  %v36 = vld [vmem:[%s0 + $0x38] sm:$0xff]
  %v37 = vlaneseq
  %v38 = vand.u32 %v37, 127
  %39 = vset.pattern.permute.xlu0 0
  %40 = vperm.xlu0 %39, %v29
  %v41 = vpop.permute.xlu0 %40
  %42 = vset.pattern.permute.xlu0 0
  %43 = vperm.xlu0 %42, %v30
  %v44 = vpop.permute.xlu0 %43
  %45 = vset.pattern.permute.xlu0 0
  %46 = vperm.xlu0 %45, %v31
  %v47 = vpop.permute.xlu0 %46
  %48 = vset.pattern.permute.xlu0 0
  %49 = vperm.xlu0 %48, %v32
  %v50 = vpop.permute.xlu0 %49
  %51 = vset.pattern.permute.xlu0 0
  %52 = vperm.xlu0 %51, %v33
  %v53 = vpop.permute.xlu0 %52
  %54 = vset.pattern.permute.xlu0 0
  %55 = vperm.xlu0 %54, %v34
  %v56 = vpop.permute.xlu0 %55
  %57 = vset.pattern.permute.xlu0 0
  %58 = vperm.xlu0 %57, %v35
  %v59 = vpop.permute.xlu0 %58
  %60 = vset.pattern.permute.xlu0 0
  %61 = vperm.xlu0 %60, %v36
  %v62 = vpop.permute.xlu0 %61
  %vm63 = vcmp.eq.s32.totalorder %v41, %v38
  %vm64 = vcmp.eq.s32.totalorder %v44, %v38
  %vm65 = vcmp.eq.s32.totalorder %v47, %v38
  %vm66 = vcmp.eq.s32.totalorder %v50, %v38
  %vm67 = vcmp.eq.s32.totalorder %v53, %v38
  %vm68 = vcmp.eq.s32.totalorder %v56, %v38
  %vm69 = vcmp.eq.s32.totalorder %v59, %v38
  %vm70 = vcmp.eq.s32.totalorder %v62, %v38
  %v71 = vsel %vm63, 1, 0
  %v72 = vsel %vm64, 1, 0
  %v73 = vsel %vm65, 1, 0
  %v74 = vsel %vm66, 1, 0
  %v75 = vsel %vm67, 1, 0
  %v76 = vsel %vm68, 1, 0
  %v77 = vsel %vm69, 1, 0
  %v78 = vsel %vm70, 1, 0
  %v79 = vcvt.s32.f32 %v71
  %v80 = vcvt.s32.f32 %v72
  %v81 = vcvt.s32.f32 %v73
  %v82 = vcvt.s32.f32 %v74
  %v83 = vcvt.s32.f32 %v75
  %v84 = vcvt.s32.f32 %v76
  %v85 = vcvt.s32.f32 %v77
  %v86 = vcvt.s32.f32 %v78
  %v87 = vld [vmem:[%s1] sm:$0xff]
  %v88 = vld [vmem:[%s1 + $0x8] sm:$0xff]
  %v89 = vld [vmem:[%s1 + $0x10] sm:$0xff]
  %v90 = vld [vmem:[%s1 + $0x18] sm:$0xff]
  %v91 = vld [vmem:[%s1 + $0x20] sm:$0xff]
  %v92 = vld [vmem:[%s1 + $0x28] sm:$0xff]
  %v93 = vld [vmem:[%s1 + $0x30] sm:$0x3]
  %vm94 = vcmask 408576
  %v96 = vsel %vm94, %v79, 0
  %v99 = vsel %vm94, %v80, 0
  %v102 = vsel %vm94, %v81, 0
  %v105 = vsel %vm94, %v82, 0
  %v108 = vsel %vm94, %v83, 0
  %v111 = vsel %vm94, %v84, 0
  %v114 = vsel %vm94, %v85, 0
  %v117 = vsel %vm94, %v86, 0
  %vm119 = vcmask 1041408
  %v121 = vsel %vm119, %v93, 0
  %123 = vmatpush.msra.mxu0 0.0
  %124 = vmatpush.msra.mxu0 0.0
  %125 = vmatpush.msra.mxu0 0.0
  %126 = vmatpush.msra.mxu0 0.0
  %127 = vmatpush.msra.mxu0 0.0
  %128 = vmatpush.msra.mxu0 0.0
  %129 = vmatpush.msra.mxu0 0.0
  %130 = vmatpush.msra.mxu0 0.0
  %131 = vmatpush.msra.mxu0 0.0
  %132 = vmatpush.msra.mxu0 %v121
  %133 = vmatpush.msra.mxu0 %v92
  %134 = vmatpush.msra.mxu0 %v91
  %135 = vmatpush.msra.mxu0 %v90
  %136 = vmatpush.msra.mxu0 %v89
  %137 = vmatpush.msra.mxu0 %v88
  %138 = vmatpush.msra.mxu0 %v87
  %139 = vmatmul.f32.gmra.mxu0 %v96
  %v140 = vpop.f32.mrf.mxu0
  %v141 = vadd.f32 0.0, %v140
  %142 = vmatmul.f32.gmra.mxu0 %v99
  %v143 = vpop.f32.mrf.mxu0
  %v144 = vadd.f32 0.0, %v143
  %145 = vmatmul.f32.gmra.mxu0 %v102
  %v146 = vpop.f32.mrf.mxu0
  %v147 = vadd.f32 0.0, %v146
  %148 = vmatmul.f32.gmra.mxu0 %v105
  %v149 = vpop.f32.mrf.mxu0
  %v150 = vadd.f32 0.0, %v149
  %151 = vmatmul.f32.gmra.mxu0 %v108
  %v152 = vpop.f32.mrf.mxu0
  %v153 = vadd.f32 0.0, %v152
  %154 = vmatmul.f32.gmra.mxu0 %v111
  %v155 = vpop.f32.mrf.mxu0
  %v156 = vadd.f32 0.0, %v155
  %157 = vmatmul.f32.gmra.mxu0 %v114
  %v158 = vpop.f32.mrf.mxu0
  %v159 = vadd.f32 0.0, %v158
  %160 = vmatmul.f32.gmra.mxu0 %v117
  %v161 = vpop.f32.mrf.mxu0
  %v162 = vadd.f32 0.0, %v161
  %163 = vdwg.mxu0
  %v164 = vld [vmem:[%s2] sm:$0xff]
  %v165 = vld [vmem:[%s2 + $0x8] sm:$0xff]
  %v166 = vld [vmem:[%s4] sm:$0x1]
  %v168 = vperm.slane %v166, 0
  %vm170 = vcmask 130048
  %v172 = vsel %vm170, %v141, 0
  %v175 = vsel %vm170, %v144, 0
  %v178 = vsel %vm170, %v147, 0
  %v181 = vsel %vm170, %v150, 0
  %v184 = vsel %vm170, %v153, 0
  %v187 = vsel %vm170, %v156, 0
  %v190 = vsel %vm170, %v159, 0
  %v193 = vsel %vm170, %v162, 0
  %195 = vmatpush.msra.mxu0 0.0
  %196 = vmatpush.msra.mxu0 0.0
  %197 = vmatpush.msra.mxu0 0.0
  %198 = vmatpush.msra.mxu0 0.0
  %199 = vmatpush.msra.mxu0 0.0
  %200 = vmatpush.msra.mxu0 0.0
  %201 = vmatpush.msra.mxu0 0.0
  %202 = vmatpush.msra.mxu0 0.0
  %203 = vmatpush.msra.mxu0 0.0
  %204 = vmatpush.msra.mxu0 0.0
  %205 = vmatpush.msra.mxu0 0.0
  %206 = vmatpush.msra.mxu0 0.0
  %207 = vmatpush.msra.mxu0 0.0
  %208 = vmatpush.msra.mxu0 0.0
  %209 = vmatpush.msra.mxu0 %v165
  %210 = vmatpush.msra.mxu0 %v164
  %211 = vmatmul.f32.gmra.mxu0 %v172
  %v212 = vpop.f32.mrf.mxu0
  %v213 = vadd.f32 %v168, %v212
  %214 = vmatmul.f32.gmra.mxu0 %v175
  %v215 = vpop.f32.mrf.mxu0
  %v216 = vadd.f32 %v168, %v215
  %217 = vmatmul.f32.gmra.mxu0 %v178
  %v218 = vpop.f32.mrf.mxu0
  %v219 = vadd.f32 %v168, %v218
  %220 = vmatmul.f32.gmra.mxu0 %v181
  %v221 = vpop.f32.mrf.mxu0
  %v222 = vadd.f32 %v168, %v221
  %223 = vmatmul.f32.gmra.mxu0 %v184
  %v224 = vpop.f32.mrf.mxu0
  %v225 = vadd.f32 %v168, %v224
  %226 = vmatmul.f32.gmra.mxu0 %v187
  %v227 = vpop.f32.mrf.mxu0
  %v228 = vadd.f32 %v168, %v227
  %229 = vmatmul.f32.gmra.mxu0 %v190
  %v230 = vpop.f32.mrf.mxu0
  %v231 = vadd.f32 %v168, %v230
  %232 = vmatmul.f32.gmra.mxu0 %v193
  %v233 = vpop.f32.mrf.mxu0
  %v234 = vadd.f32 %v168, %v233
  %235 = vdwg.mxu0
  %v236 = vld [vmem:[%s3] sm:$0xff]
  %v237 = vld [vmem:[%s3 + $0x8] sm:$0xff]
  %v238 = vld [vmem:[%s3 + $0x10] sm:$0xff]
  %v239 = vld [vmem:[%s3 + $0x18] sm:$0xff]
  %v240 = vpack.c.bf16 %v237, %v236
  %v241 = vpack.c.bf16 %v239, %v238
  %vm242 = vcmask 261120
  %v244 = vsel %vm242, 0, 0
  %246 = vmatpush.bf16.msra.mxu0 0
  %247 = vmatpush.bf16.msra.mxu0 0
  %248 = vmatpush.bf16.msra.mxu0 0
  %249 = vmatpush.bf16.msra.mxu0 0
  %250 = vmatpush.bf16.msra.mxu0 0
  %251 = vmatpush.bf16.msra.mxu0 0
  %252 = vmatpush.bf16.msra.mxu0 %v241
  %253 = vmatpush.bf16.msra.mxu0 %v240
  %254 = vmatmul.bf16.gmra.mxu0 %v244
  %v255 = vpop.f32.mrf.mxu0
  %v256 = vadd.f32 0.0, %v255
  %v257 = vpop.f32.mrf.mxu0
  %258 = vdwg.mxu0
  %v259 = vadd.f32 %v213, %v256
  %v260 = vxor.u32 %v259, 2147483648
  %v261 = vmul.f32 %v260, 1.442695
  %v262 = vpow.pop %v261
  %v263 = vadd.f32 %v262, 1.0
  %v264 = vrcp.pop %v263
  %v265 = vmul.f32 %v263, %v264
  %v266 = vsub.f32 1.0, %v265
  %v267 = vmul.f32 %v264, %v266
  %v268 = vadd.f32 %v264, %v267
  %vm269 = vweird.f32 %v263
  %vm270 = vweird.f32 %v264
  %vm271 = vmor %vm269, %vm270
  %v272 = vsel %vm271, %v264, %v268
  %v273 = vand.u32 2147483647, %v263
  %vm274 = vcmp.eq.f32.partialorder %v273, 8.507059e+37
  %v275 = vand.u32 %v263, 2147483648
  %v276 = vor.u32 1.1754944e-38, %v275
  %v277 = vsel %vm274, %v276, %v272
  %v278 = vmul.f32 1.0, %v277
  %v279 = vtanh.pop %v259
  %v280 = vmul.f32 %v278, 0.0
  %282 = vrot.lane.b32.xlu0 %v279, 64
  %v283 = vpop.permute.xlu0 %282
  %v285 = vmul.f32 %v278, %v283
  %287 = vrot.lane.b32.xlu0 %v285, 32
  %v288 = vpop.permute.xlu0 %287
  %v290 = vadd.f32 %v280, %v288
  %v291 = vtanh.pop %v290
  %293 = vrot.lane.b32.xlu0 %v291, 64
  %v294 = vpop.permute.xlu0 %293
  %v296 = vmul.f32 %v278, %v294
  %v297 = vpack.c.bf16 %v296, %v296
  %299 = vrot.lane.b32.xlu0 %v297, 32
  %v300 = vpop.permute.xlu0 %299
  %v302 = vsel %vm242, %v300, 0
  %304 = vmatpush.bf16.msra.mxu0 0
  %305 = vmatpush.bf16.msra.mxu0 0
  %306 = vmatpush.bf16.msra.mxu0 0
  %307 = vmatpush.bf16.msra.mxu0 0
  %308 = vmatpush.bf16.msra.mxu0 0
  %309 = vmatpush.bf16.msra.mxu0 0
  %310 = vmatpush.bf16.msra.mxu0 %v241
  %311 = vmatpush.bf16.msra.mxu0 %v240
  %312 = vmatmul.bf16.gmra.mxu0 %v302
  %v313 = vpop.f32.mrf.mxu0
  %v314 = vadd.f32 0.0, %v313
  %v315 = vpop.f32.mrf.mxu0
  %316 = vdwg.mxu0
  %v317 = vadd.f32 %v216, %v314
  %v318 = vxor.u32 %v317, 2147483648
  %v319 = vmul.f32 %v318, 1.442695
  %v320 = vpow.pop %v319
  %v321 = vadd.f32 %v320, 1.0
  %v322 = vrcp.pop %v321
  %v323 = vmul.f32 %v321, %v322
  %v324 = vsub.f32 1.0, %v323
  %v325 = vmul.f32 %v322, %v324
  %v326 = vadd.f32 %v322, %v325
  %vm327 = vweird.f32 %v321
  %vm328 = vweird.f32 %v322
  %vm329 = vmor %vm327, %vm328
  %v330 = vsel %vm329, %v322, %v326
  %v331 = vand.u32 2147483647, %v321
  %vm332 = vcmp.eq.f32.partialorder %v331, 8.507059e+37
  %v333 = vand.u32 %v321, 2147483648
  %v334 = vor.u32 1.1754944e-38, %v333
  %v335 = vsel %vm332, %v334, %v330
  %v336 = vmul.f32 1.0, %v335
  %v337 = vtanh.pop %v317
  %v338 = vmul.f32 %v336, %v290
  %340 = vrot.lane.b32.xlu0 %v337, 64
  %v341 = vpop.permute.xlu0 %340
  %v343 = vmul.f32 %v336, %v341
  %345 = vrot.lane.b32.xlu0 %v343, 32
  %v346 = vpop.permute.xlu0 %345
  %v348 = vadd.f32 %v338, %v346
  %v349 = vtanh.pop %v348
  %351 = vrot.lane.b32.xlu0 %v349, 64
  %v352 = vpop.permute.xlu0 %351
  %v354 = vmul.f32 %v336, %v352
  %v355 = vpack.c.bf16 %v354, %v354
  %357 = vrot.lane.b32.xlu0 %v355, 32
  %v358 = vpop.permute.xlu0 %357
  %v360 = vsel %vm242, %v358, 0
  %362 = vmatpush.bf16.msra.mxu0 0
  %363 = vmatpush.bf16.msra.mxu0 0
  %364 = vmatpush.bf16.msra.mxu0 0
  %365 = vmatpush.bf16.msra.mxu0 0
  %366 = vmatpush.bf16.msra.mxu0 0
  %367 = vmatpush.bf16.msra.mxu0 0
  %368 = vmatpush.bf16.msra.mxu0 %v241
  %369 = vmatpush.bf16.msra.mxu0 %v240
  %370 = vmatmul.bf16.gmra.mxu0 %v360
  %v371 = vpop.f32.mrf.mxu0
  %v372 = vadd.f32 0.0, %v371
  %v373 = vpop.f32.mrf.mxu0
  %374 = vdwg.mxu0
  %v375 = vadd.f32 %v219, %v372
  %v376 = vxor.u32 %v375, 2147483648
  %v377 = vmul.f32 %v376, 1.442695
  %v378 = vpow.pop %v377
  %v379 = vadd.f32 %v378, 1.0
  %v380 = vrcp.pop %v379
  %v381 = vmul.f32 %v379, %v380
  %v382 = vsub.f32 1.0, %v381
  %v383 = vmul.f32 %v380, %v382
  %v384 = vadd.f32 %v380, %v383
  %vm385 = vweird.f32 %v379
  %vm386 = vweird.f32 %v380
  %vm387 = vmor %vm385, %vm386
  %v388 = vsel %vm387, %v380, %v384
  %v389 = vand.u32 2147483647, %v379
  %vm390 = vcmp.eq.f32.partialorder %v389, 8.507059e+37
  %v391 = vand.u32 %v379, 2147483648
  %v392 = vor.u32 1.1754944e-38, %v391
  %v393 = vsel %vm390, %v392, %v388
  %v394 = vmul.f32 1.0, %v393
  %v395 = vtanh.pop %v375
  %v396 = vmul.f32 %v394, %v348
  %398 = vrot.lane.b32.xlu0 %v395, 64
  %v399 = vpop.permute.xlu0 %398
  %v401 = vmul.f32 %v394, %v399
  %403 = vrot.lane.b32.xlu0 %v401, 32
  %v404 = vpop.permute.xlu0 %403
  %v406 = vadd.f32 %v396, %v404
  %v407 = vtanh.pop %v406
  %409 = vrot.lane.b32.xlu0 %v407, 64
  %v410 = vpop.permute.xlu0 %409
  %v412 = vmul.f32 %v394, %v410
  %v413 = vpack.c.bf16 %v412, %v412
  %415 = vrot.lane.b32.xlu0 %v413, 32
  %v416 = vpop.permute.xlu0 %415
  %v418 = vsel %vm242, %v416, 0
  %420 = vmatpush.bf16.msra.mxu0 0
  %421 = vmatpush.bf16.msra.mxu0 0
  %422 = vmatpush.bf16.msra.mxu0 0
  %423 = vmatpush.bf16.msra.mxu0 0
  %424 = vmatpush.bf16.msra.mxu0 0
  %425 = vmatpush.bf16.msra.mxu0 0
  %426 = vmatpush.bf16.msra.mxu0 %v241
  %427 = vmatpush.bf16.msra.mxu0 %v240
  %428 = vmatmul.bf16.gmra.mxu0 %v418
  %v429 = vpop.f32.mrf.mxu0
  %v430 = vadd.f32 0.0, %v429
  %v431 = vpop.f32.mrf.mxu0
  %432 = vdwg.mxu0
  %v433 = vadd.f32 %v222, %v430
  %v434 = vxor.u32 %v433, 2147483648
  %v435 = vmul.f32 %v434, 1.442695
  %v436 = vpow.pop %v435
  %v437 = vadd.f32 %v436, 1.0
  %v438 = vrcp.pop %v437
  %v439 = vmul.f32 %v437, %v438
  %v440 = vsub.f32 1.0, %v439
  %v441 = vmul.f32 %v438, %v440
  %v442 = vadd.f32 %v438, %v441
  %vm443 = vweird.f32 %v437
  %vm444 = vweird.f32 %v438
  %vm445 = vmor %vm443, %vm444
  %v446 = vsel %vm445, %v438, %v442
  %v447 = vand.u32 2147483647, %v437
  %vm448 = vcmp.eq.f32.partialorder %v447, 8.507059e+37
  %v449 = vand.u32 %v437, 2147483648
  %v450 = vor.u32 1.1754944e-38, %v449
  %v451 = vsel %vm448, %v450, %v446
  %v452 = vmul.f32 1.0, %v451
  %v453 = vtanh.pop %v433
  %v454 = vmul.f32 %v452, %v406
  %456 = vrot.lane.b32.xlu0 %v453, 64
  %v457 = vpop.permute.xlu0 %456
  %v459 = vmul.f32 %v452, %v457
  %461 = vrot.lane.b32.xlu0 %v459, 32
  %v462 = vpop.permute.xlu0 %461
  %v464 = vadd.f32 %v454, %v462
  %v465 = vtanh.pop %v464
  %467 = vrot.lane.b32.xlu0 %v465, 64
  %v468 = vpop.permute.xlu0 %467
  %v470 = vmul.f32 %v452, %v468
  %v471 = vpack.c.bf16 %v470, %v470
  %473 = vrot.lane.b32.xlu0 %v471, 32
  %v474 = vpop.permute.xlu0 %473
  %v476 = vsel %vm242, %v474, 0
  %478 = vmatpush.bf16.msra.mxu0 0
  %479 = vmatpush.bf16.msra.mxu0 0
  %480 = vmatpush.bf16.msra.mxu0 0
  %481 = vmatpush.bf16.msra.mxu0 0
  %482 = vmatpush.bf16.msra.mxu0 0
  %483 = vmatpush.bf16.msra.mxu0 0
  %484 = vmatpush.bf16.msra.mxu0 %v241
  %485 = vmatpush.bf16.msra.mxu0 %v240
  %486 = vmatmul.bf16.gmra.mxu0 %v476
  %v487 = vpop.f32.mrf.mxu0
  %v488 = vadd.f32 0.0, %v487
  %v489 = vpop.f32.mrf.mxu0
  %490 = vdwg.mxu0
  %v491 = vadd.f32 %v225, %v488
  %v492 = vxor.u32 %v491, 2147483648
  %v493 = vmul.f32 %v492, 1.442695
  %v494 = vpow.pop %v493
  %v495 = vadd.f32 %v494, 1.0
  %v496 = vrcp.pop %v495
  %v497 = vmul.f32 %v495, %v496
  %v498 = vsub.f32 1.0, %v497
  %v499 = vmul.f32 %v496, %v498
  %v500 = vadd.f32 %v496, %v499
  %vm501 = vweird.f32 %v495
  %vm502 = vweird.f32 %v496
  %vm503 = vmor %vm501, %vm502
  %v504 = vsel %vm503, %v496, %v500
  %v505 = vand.u32 2147483647, %v495
  %vm506 = vcmp.eq.f32.partialorder %v505, 8.507059e+37
  %v507 = vand.u32 %v495, 2147483648
  %v508 = vor.u32 1.1754944e-38, %v507
  %v509 = vsel %vm506, %v508, %v504
  %v510 = vmul.f32 1.0, %v509
  %v511 = vtanh.pop %v491
  %v512 = vmul.f32 %v510, %v464
  %514 = vrot.lane.b32.xlu0 %v511, 64
  %v515 = vpop.permute.xlu0 %514
  %v517 = vmul.f32 %v510, %v515
  %519 = vrot.lane.b32.xlu0 %v517, 32
  %v520 = vpop.permute.xlu0 %519
  %v522 = vadd.f32 %v512, %v520
  %v523 = vtanh.pop %v522
  %525 = vrot.lane.b32.xlu0 %v523, 64
  %v526 = vpop.permute.xlu0 %525
  %v528 = vmul.f32 %v510, %v526
  %v529 = vpack.c.bf16 %v528, %v528
  %531 = vrot.lane.b32.xlu0 %v529, 32
  %v532 = vpop.permute.xlu0 %531
  %v534 = vsel %vm242, %v532, 0
  %536 = vmatpush.bf16.msra.mxu0 0
  %537 = vmatpush.bf16.msra.mxu0 0
  %538 = vmatpush.bf16.msra.mxu0 0
  %539 = vmatpush.bf16.msra.mxu0 0
  %540 = vmatpush.bf16.msra.mxu0 0
  %541 = vmatpush.bf16.msra.mxu0 0
  %542 = vmatpush.bf16.msra.mxu0 %v241
  %543 = vmatpush.bf16.msra.mxu0 %v240
  %544 = vmatmul.bf16.gmra.mxu0 %v534
  %v545 = vpop.f32.mrf.mxu0
  %v546 = vadd.f32 0.0, %v545
  %v547 = vpop.f32.mrf.mxu0
  %548 = vdwg.mxu0
  %v549 = vadd.f32 %v228, %v546
  %v550 = vxor.u32 %v549, 2147483648
  %v551 = vmul.f32 %v550, 1.442695
  %v552 = vpow.pop %v551
  %v553 = vadd.f32 %v552, 1.0
  %v554 = vrcp.pop %v553
  %v555 = vmul.f32 %v553, %v554
  %v556 = vsub.f32 1.0, %v555
  %v557 = vmul.f32 %v554, %v556
  %v558 = vadd.f32 %v554, %v557
  %vm559 = vweird.f32 %v553
  %vm560 = vweird.f32 %v554
  %vm561 = vmor %vm559, %vm560
  %v562 = vsel %vm561, %v554, %v558
  %v563 = vand.u32 2147483647, %v553
  %vm564 = vcmp.eq.f32.partialorder %v563, 8.507059e+37
  %v565 = vand.u32 %v553, 2147483648
  %v566 = vor.u32 1.1754944e-38, %v565
  %v567 = vsel %vm564, %v566, %v562
  %v568 = vmul.f32 1.0, %v567
  %v569 = vtanh.pop %v549
  %v570 = vmul.f32 %v568, %v522
  %572 = vrot.lane.b32.xlu0 %v569, 64
  %v573 = vpop.permute.xlu0 %572
  %v575 = vmul.f32 %v568, %v573
  %577 = vrot.lane.b32.xlu0 %v575, 32
  %v578 = vpop.permute.xlu0 %577
  %v580 = vadd.f32 %v570, %v578
  %v581 = vtanh.pop %v580
  %583 = vrot.lane.b32.xlu0 %v581, 64
  %v584 = vpop.permute.xlu0 %583
  %v586 = vmul.f32 %v568, %v584
  %v587 = vpack.c.bf16 %v586, %v586
  %589 = vrot.lane.b32.xlu0 %v587, 32
  %v590 = vpop.permute.xlu0 %589
  %v592 = vsel %vm242, %v590, 0
  %594 = vmatpush.bf16.msra.mxu0 0
  %595 = vmatpush.bf16.msra.mxu0 0
  %596 = vmatpush.bf16.msra.mxu0 0
  %597 = vmatpush.bf16.msra.mxu0 0
  %598 = vmatpush.bf16.msra.mxu0 0
  %599 = vmatpush.bf16.msra.mxu0 0
  %600 = vmatpush.bf16.msra.mxu0 %v241
  %601 = vmatpush.bf16.msra.mxu0 %v240
  %602 = vmatmul.bf16.gmra.mxu0 %v592
  %v603 = vpop.f32.mrf.mxu0
  %v604 = vadd.f32 0.0, %v603
  %v605 = vpop.f32.mrf.mxu0
  %606 = vdwg.mxu0
  %v607 = vadd.f32 %v231, %v604
  %v608 = vxor.u32 %v607, 2147483648
  %v609 = vmul.f32 %v608, 1.442695
  %v610 = vpow.pop %v609
  %v611 = vadd.f32 %v610, 1.0
  %v612 = vrcp.pop %v611
  %v613 = vmul.f32 %v611, %v612
  %v614 = vsub.f32 1.0, %v613
  %v615 = vmul.f32 %v612, %v614
  %v616 = vadd.f32 %v612, %v615
  %vm617 = vweird.f32 %v611
  %vm618 = vweird.f32 %v612
  %vm619 = vmor %vm617, %vm618
  %v620 = vsel %vm619, %v612, %v616
  %v621 = vand.u32 2147483647, %v611
  %vm622 = vcmp.eq.f32.partialorder %v621, 8.507059e+37
  %v623 = vand.u32 %v611, 2147483648
  %v624 = vor.u32 1.1754944e-38, %v623
  %v625 = vsel %vm622, %v624, %v620
  %v626 = vmul.f32 1.0, %v625
  %v627 = vtanh.pop %v607
  %v628 = vmul.f32 %v626, %v580
  %630 = vrot.lane.b32.xlu0 %v627, 64
  %v631 = vpop.permute.xlu0 %630
  %v633 = vmul.f32 %v626, %v631
  %635 = vrot.lane.b32.xlu0 %v633, 32
  %v636 = vpop.permute.xlu0 %635
  %v638 = vadd.f32 %v628, %v636
  %v639 = vtanh.pop %v638
  %641 = vrot.lane.b32.xlu0 %v639, 64
  %v642 = vpop.permute.xlu0 %641
  %v644 = vmul.f32 %v626, %v642
  %v645 = vpack.c.bf16 %v644, %v644
  %647 = vrot.lane.b32.xlu0 %v645, 32
  %v648 = vpop.permute.xlu0 %647
  %v650 = vsel %vm242, %v648, 0
  %652 = vmatpush.bf16.msra.mxu0 0
  %653 = vmatpush.bf16.msra.mxu0 0
  %654 = vmatpush.bf16.msra.mxu0 0
  %655 = vmatpush.bf16.msra.mxu0 0
  %656 = vmatpush.bf16.msra.mxu0 0
  %657 = vmatpush.bf16.msra.mxu0 0
  %658 = vmatpush.bf16.msra.mxu0 %v241
  %659 = vmatpush.bf16.msra.mxu0 %v240
  %660 = vmatmul.bf16.gmra.mxu0 %v650
  %v661 = vpop.f32.mrf.mxu0
  %v662 = vadd.f32 0.0, %v661
  %v663 = vpop.f32.mrf.mxu0
  %664 = vdwg.mxu0
  %v665 = vadd.f32 %v234, %v662
  %v666 = vxor.u32 %v665, 2147483648
  %v667 = vmul.f32 %v666, 1.442695
  %v668 = vpow.pop %v667
  %v669 = vadd.f32 %v668, 1.0
  %v670 = vrcp.pop %v669
  %v671 = vmul.f32 %v669, %v670
  %v672 = vsub.f32 1.0, %v671
  %v673 = vmul.f32 %v670, %v672
  %v674 = vadd.f32 %v670, %v673
  %vm675 = vweird.f32 %v669
  %vm676 = vweird.f32 %v670
  %vm677 = vmor %vm675, %vm676
  %v678 = vsel %vm677, %v670, %v674
  %v679 = vand.u32 2147483647, %v669
  %vm680 = vcmp.eq.f32.partialorder %v679, 8.507059e+37
  %v681 = vand.u32 %v669, 2147483648
  %v682 = vor.u32 1.1754944e-38, %v681
  %v683 = vsel %vm680, %v682, %v678
  %v684 = vmul.f32 1.0, %v683
  %v685 = vtanh.pop %v665
  %v686 = vmul.f32 %v684, %v638
  %688 = vrot.lane.b32.xlu0 %v685, 64
  %v689 = vpop.permute.xlu0 %688
  %v691 = vmul.f32 %v684, %v689
  %693 = vrot.lane.b32.xlu0 %v691, 32
  %v694 = vpop.permute.xlu0 %693
  %v696 = vadd.f32 %v686, %v694
  %v697 = vtanh.pop %v696
  %699 = vrot.lane.b32.xlu0 %v697, 64
  %v700 = vpop.permute.xlu0 %699
  %v702 = vmul.f32 %v684, %v700
  %v703 = vld [vmem:[%s5] sm:$0x1]
  %v705 = vperm.slane %v703, 0
  %706 = vrot.lane.b32.xlu0 %v705, 96
  %v707 = vpop.permute.xlu0 %706
  %v709 = vmul.f32 %v702, %v707
  %711 = vrot.lane.b32.xlu0 %v709, 32
  %v712 = vpop.permute.xlu0 %711
  %v714 = vsel %vm242, %v712, 0.0
  %715 = vadd.xlane.f32.xlu0 %v714
  %v716 = vpop.xlane.xlu0 %715
  %v717 = vld [vmem:[#allocation2] sm:$0x1]
  %v719 = vperm.slane %v717, 0
  %v721 = vadd.f32 %v716, %v719
  %vm722 = vcmask 7168
  %723 = vst.msk [vmem:[%s7] sm:$0xff] %vm722, %v721
  // Predicated region
  $region30: #{tpu_custom_call.1} parent=0 // pred_check
    _
  $region31: #{tpu_custom_call.1} parent=0 // pred_check_branch
    %725 = sbr.rel (0) target = $region33
  $region32: #{tpu_custom_call.1} parent=0 // pred_region
    _
  $region33: #{tpu_custom_call.1} parent=0 // pred_fallthru
    _
  // Predicated region
  $region34: #{tpu_custom_call.1} parent=0 // pred_check
    _
  $region35: #{tpu_custom_call.1} parent=0 // pred_check_branch
    %727 = sbr.rel (0) target = $region37
  $region36: #{tpu_custom_call.1} parent=0 // pred_region
    _
  $region37: #{tpu_custom_call.1} parent=0 // pred_fallthru
    _

</llo_original>
